<compile_context>
chip_gen: v6e
topology: v6e:2x2x1
jax: 0.10.0
libtpu: 0.0.40
codegen_flags: <defaults>
</compile_context>

<pallas_src>
import functools
from typing import NamedTuple

import jax
import jax.numpy as jnp
from jax.experimental import pallas as pl
from jax.experimental.pallas import tpu as pltpu


# --------------------------------------------------------------------------
# Activations (match the PyTorch module's act_fns table).
# --------------------------------------------------------------------------
def _apply_act(u, activation):
    if activation == "SiLU":
        return u * jax.nn.sigmoid(u)
    if activation == "ReLU":
        return jnp.maximum(u, 0.0)
    if activation == "GELU":
        # nn.GELU() default is the exact (erf) formulation.
        return jax.nn.gelu(u, approximate=False)
    if activation == "SquaredReLU":
        r = jnp.maximum(u, 0.0)
        return r * r
    raise ValueError(f"unknown activation {activation}")


def _round_up(n, m):
    return ((n + m - 1) // m) * m


# --------------------------------------------------------------------------
# Weight preparation (hoisted out of the forward path — do this once at init).
# --------------------------------------------------------------------------
class PackedOlmoWeights(NamedTuple):
    wgu: jax.Array        # (2, H_pad, I_pad): [0]=gate W, [1]=up W, compute dtype
    wd: jax.Array         # (I_pad, H_pad): down W, compute dtype
    hidden: int           # H (unpadded)
    intermediate: int     # I (unpadded)
    ti_base: int          # I_pad is a multiple of this


def prepare_olmo_mlp_weights(wg, wu, wd, *, ti=512, compute_dtype=jnp.bfloat16):
    """Cast/pad/pack the three projection weights once.

    wg, wu: (H, I)   (i.e. gate_proj.weight.T / up_proj.weight.T)
    wd:     (I, H)   (down_proj.weight.T)
    """
    H, I = wg.shape
    assert wu.shape == (H, I) and wd.shape == (I, H)
    ti_base = max(128, _round_up(min(ti, _round_up(I, 128)), 128))
    H_pad = _round_up(H, 128)
    I_pad = _round_up(I, ti_base)
    wg_p = jnp.pad(wg.astype(compute_dtype), ((0, H_pad - H), (0, I_pad - I)))
    wu_p = jnp.pad(wu.astype(compute_dtype), ((0, H_pad - H), (0, I_pad - I)))
    wd_p = jnp.pad(wd.astype(compute_dtype), ((0, I_pad - I), (0, H_pad - H)))
    wgu = jnp.stack([wg_p, wu_p], axis=0)   # single fused gate|up weight operand
    return PackedOlmoWeights(wgu=wgu, wd=wd_p, hidden=H, intermediate=I,
                             ti_base=ti_base)


# --------------------------------------------------------------------------
# Kernel.
# --------------------------------------------------------------------------
def olmo_mlp_kernel(x_ref, wgu_ref, wd_ref, o_ref, *scratch, activation):
    # When the output dtype is f32 there is no scratch: accumulate directly
    # into the resident output block (its index_map ignores j).
    acc_ref = scratch[0] if scratch else o_ref
    j = pl.program_id(1)

    @pl.when(j == 0)
    def _init():
        acc_ref[...] = jnp.zeros_like(acc_ref)

    x = x_ref[...]
    gate = jnp.dot(x, wgu_ref[0], preferred_element_type=jnp.float32)
    up = jnp.dot(x, wgu_ref[1], preferred_element_type=jnp.float32)
    h = (gate * _apply_act(up, activation)).astype(wd_ref.dtype)
    acc_ref[...] += jnp.dot(h, wd_ref[...], preferred_element_type=jnp.float32)

    if scratch:
        @pl.when(j == pl.num_programs(1) - 1)
        def _finalize():
            o_ref[...] = acc_ref[...].astype(o_ref.dtype)


# --------------------------------------------------------------------------
# Tile sizing helpers.
# --------------------------------------------------------------------------
def _tpu_params():
    kind = ""
    try:
        kind = (getattr(jax.devices()[0], "device_kind", "") or "").lower()
    except Exception:
        pass
    is_v7 = "v7" in kind
    vmem = (64 << 20) if is_v7 else (128 << 20)
    try:
        info = pltpu.get_tpu_info()
        vmem = int(getattr(info, "vmem_capacity_bytes", vmem) or vmem)
    except Exception:
        pass
    num_tc = 2 if is_v7 else 1   # v7x has 2 TensorCores/chip sharing parallel axes
    return vmem, num_tc, kind


def _default_tiles(M, vmem_bytes, kind):
    # Per-step arithmetic intensity = tm FLOP per weight byte.  Pick tm past
    # each generation's MXU/HBM roofline crossover; ti sized so tiles fit VMEM.
    if "v7" in kind or vmem_bytes <= (96 << 20):
        tm, ti = 512, 256        # v7x: ~310 FLOP/B threshold, 64 MiB VMEM/TC
    elif "v6" in kind:
        tm, ti = 1024, 512       # v6e: ~650 FLOP/B threshold, 128 MiB VMEM
    else:
        tm, ti = 512, 512        # v5e / unknown: ~240 FLOP/B threshold
    if M <= 256:
        ti = 2048                # decode: weight-BW bound -> fewer, larger weight DMAs
    return tm, ti


def _pick_ti(ti_base, I_pad, desired):
    # Largest multiple of ti_base that divides I_pad and is <= desired.
    n = I_pad // ti_base
    best = ti_base
    for k in range(1, n + 1):
        if n % k == 0 and ti_base * k <= desired:
            best = max(best, ti_base * k)
    return best


def _tile_vmem_bytes(tm, ti, H_pad, cbytes, obytes, use_scratch, wbuf):
    return (2 * tm * H_pad * cbytes                  # x tile (double-buffered)
            + wbuf * 2 * H_pad * ti * cbytes         # fused gate|up weight tile
            + wbuf * ti * H_pad * cbytes             # down weight tile
            + 2 * tm * H_pad * obytes                # output tile
            + (tm * H_pad * 4 if use_scratch else 0))  # f32 accumulator scratch


# --------------------------------------------------------------------------
# Forward.
# --------------------------------------------------------------------------
def olmo_mlp_packed(x, weights: PackedOlmoWeights, *, activation="SiLU",
                    tm=None, ti=None):
    """x: (..., H).  Returns same shape/dtype as x."""
    orig_shape = x.shape
    H = weights.hidden
    I = weights.intermediate
    assert orig_shape[-1] == H
    M = 1
    for d in orig_shape[:-1]:
        M *= d

    out_dtype = x.dtype
    compute_dtype = weights.wgu.dtype
    cbytes = jnp.dtype(compute_dtype).itemsize
    obytes = jnp.dtype(out_dtype).itemsize
    _, H_pad, I_pad = weights.wgu.shape

    vmem_bytes, num_tc, kind = _tpu_params()
    tm_def, ti_def = _default_tiles(M, vmem_bytes, kind)
    if tm is None:
        tm = tm_def
    if ti is None:
        ti = ti_def
    ti_eff = _pick_ti(weights.ti_base, I_pad, max(ti, weights.ti_base))

    row_mult = 16 if jnp.dtype(compute_dtype) == jnp.dtype(jnp.bfloat16) else 8
    tm_eff = _round_up(min(tm, _round_up(M, row_mult)), row_mult)
    # v7x: keep >= 2 i-tiles so the "parallel" axis shards across both TCs.
    if num_tc >= 2 and M > row_mult:
        tm_eff = min(tm_eff, max(row_mult, _round_up(pl.cdiv(M, num_tc), row_mult)))

    use_scratch = out_dtype != jnp.float32
    n_j = I_pad // ti_eff
    deep_weights = (M <= 64) and (n_j >= 4) and hasattr(pl, "Buffered")
    wbuf = 3 if deep_weights else 2

    # Fit the per-step footprint under the physical VMEM budget (64 MiB/TC on v7x).
    budget = max(16 << 20, int(0.85 * vmem_bytes))
    while (_tile_vmem_bytes(tm_eff, ti_eff, H_pad, cbytes, obytes, use_scratch, wbuf)
           > budget and tm_eff > row_mult):
        tm_eff = max(row_mult, _round_up(tm_eff // 2, row_mult))
    while (_tile_vmem_bytes(tm_eff, ti_eff, H_pad, cbytes, obytes, use_scratch, wbuf)
           > budget and ti_eff > weights.ti_base):
        ti_eff = _pick_ti(weights.ti_base, I_pad, ti_eff - weights.ti_base)
    n_j = I_pad // ti_eff

    M_pad = _round_up(M, tm_eff)
    grid = (M_pad // tm_eff, n_j)

    x2d = jnp.pad(x.reshape(M, H).astype(compute_dtype),
                  ((0, M_pad - M), (0, H_pad - H)))

    tile_bytes = _tile_vmem_bytes(tm_eff, ti_eff, H_pad, cbytes, obytes,
                                  use_scratch, wbuf)
    vmem_limit = min(budget, int(tile_bytes * 1.25) + (8 << 20))
    vmem_limit = max(vmem_limit, min(budget, 32 << 20))

    # Advisory cost: weights are re-streamed grid[0] = M_pad/tm times.
    flops = 6 * M * H * I
    transcendentals = M * I if activation in ("SiLU", "GELU") else 0
    bytes_accessed = (M * H * (cbytes + obytes)
                      + grid[0] * 3 * H_pad * I_pad * cbytes)
    cost = pl.CostEstimate(flops=int(flops), transcendentals=int(transcendentals),
                           bytes_accessed=int(bytes_accessed))

    def weight_spec(block_shape, index_map):
        if deep_weights:
            try:
                return pl.BlockSpec(block_shape, index_map,
                                    pipeline_mode=pl.Buffered(3))
            except TypeError:
                pass
        return pl.BlockSpec(block_shape, index_map)

    kernel = functools.partial(olmo_mlp_kernel, activation=activation)
    scratch_shapes = ([pltpu.VMEM((tm_eff, H_pad), jnp.float32)]
                      if use_scratch else [])

    out2d = pl.pallas_call(
        kernel,
        out_shape=jax.ShapeDtypeStruct((M_pad, H_pad), out_dtype),
        grid_spec=pltpu.PrefetchScalarGridSpec(
            num_scalar_prefetch=0,
            grid=grid,
            in_specs=[
                pl.BlockSpec((tm_eff, H_pad), lambda i, j: (i, 0)),        # x tile
                weight_spec((2, H_pad, ti_eff), lambda i, j: (0, 0, j)),   # gate|up
                weight_spec((ti_eff, H_pad), lambda i, j: (j, 0)),         # down
            ],
            out_specs=pl.BlockSpec((tm_eff, H_pad), lambda i, j: (i, 0)),
            scratch_shapes=scratch_shapes,
        ),
        compiler_params=pltpu.CompilerParams(
            dimension_semantics=("parallel", "arbitrary"),
            vmem_limit_bytes=int(vmem_limit),
        ),
        cost_estimate=cost,
    )(x2d, weights.wgu, weights.wd)

    return out2d[:M, :H].reshape(orig_shape)


def olmo_mlp(x, wg, wu, wd, *, activation="SiLU", compute_dtype=jnp.bfloat16,
             tm=None, ti=None):
    """One-shot convenience wrapper.  For repeated calls, call
    prepare_olmo_mlp_weights() once and use olmo_mlp_packed()."""
    packed = prepare_olmo_mlp_weights(wg, wu, wd, compute_dtype=compute_dtype)
    return olmo_mlp_packed(x, packed, activation=activation, tm=tm, ti=ti)


# --------------------------------------------------------------------------
# Plain-JAX reference (same bf16-in / f32-accumulate path).
# --------------------------------------------------------------------------
def olmo_mlp_reference(x, wg, wu, wd, *, activation="SiLU",
                       compute_dtype=jnp.bfloat16):
    xc = x.astype(compute_dtype)
    gate = jnp.einsum("...h,hi->...i", xc, wg.astype(compute_dtype),
                      preferred_element_type=jnp.float32)
    up = jnp.einsum("...h,hi->...i", xc, wu.astype(compute_dtype),
                    preferred_element_type=jnp.float32)
    h = (gate * _apply_act(up, activation)).astype(compute_dtype)
    out = jnp.einsum("...i,ih->...h", h, wd.astype(compute_dtype),
                     preferred_element_type=jnp.float32)
    return out.astype(x.dtype)


if __name__ == "__main__":
    keys = jax.random.split(jax.random.PRNGKey(0), 8)

    # Test 1: aligned shapes, f32 output (direct accumulation into o_ref).
    B, S, H, I = 2, 8, 128, 256
    x = jax.random.normal(keys[0], (B, S, H), dtype=jnp.float32)
    wg = jax.random.normal(keys[1], (H, I), dtype=jnp.float32) * (1.0 / H ** 0.5)
    wu = jax.random.normal(keys[2], (H, I), dtype=jnp.float32) * (1.0 / H ** 0.5)
    wd = jax.random.normal(keys[3], (I, H), dtype=jnp.float32) * (1.0 / I ** 0.5)

    packed = prepare_olmo_mlp_weights(wg, wu, wd)          # once, at "init"
    out = olmo_mlp_packed(x, packed, activation="SiLU")
    jax.block_until_ready(out)
    ref = olmo_mlp_reference(x, wg, wu, wd, activation="SiLU")
    assert out.shape == (B, S, H)
    assert jnp.allclose(out, ref, atol=2e-2, rtol=2e-2), "mismatch (SiLU)"

    # Test 2: unaligned shapes, bf16 output (scratch-accumulator path) + padding.
    B2, S2, H2, I2 = 2, 7, 96, 200
    x2 = jax.random.normal(keys[4], (B2, S2, H2), dtype=jnp.bfloat16)
    wg2 = jax.random.normal(keys[5], (H2, I2), dtype=jnp.float32) * (1.0 / H2 ** 0.5)
    wu2 = jax.random.normal(keys[6], (H2, I2), dtype=jnp.float32) * (1.0 / H2 ** 0.5)
    wd2 = jax.random.normal(keys[7], (I2, H2), dtype=jnp.float32) * (1.0 / I2 ** 0.5)

    packed2 = prepare_olmo_mlp_weights(wg2, wu2, wd2)
    out2 = olmo_mlp_packed(x2, packed2, activation="SquaredReLU")
    jax.block_until_ready(out2)
    ref2 = olmo_mlp_reference(x2, wg2, wu2, wd2, activation="SquaredReLU")
    assert out2.shape == (B2, S2, H2)
    assert jnp.allclose(out2.astype(jnp.float32), ref2.astype(jnp.float32),
                        atol=5e-2, rtol=5e-2), "mismatch (SquaredReLU)"

    print("KERNEL_OK")
</pallas_src>

<mosaic_0001>
module attributes {stable_mosaic.version = 11 : i64} {
  func.func @olmo_mlp_kernel(%arg0: i32, %arg1: i32, %arg2: memref<16x128xbf16, #tpu.memory_space<vmem>>, %arg3: memref<2x128x256xbf16, #tpu.memory_space<vmem>>, %arg4: memref<256x128xbf16, #tpu.memory_space<vmem>>, %arg5: memref<16x128xf32, #tpu.memory_space<vmem>>) attributes {dimension_semantics = [#tpu.dimension_semantics<parallel>, #tpu.dimension_semantics<arbitrary>], iteration_bounds = array<i64: 1, 1>, scalar_prefetch = 0 : i64, scratch_operands = 0 : i64, tpu.core_type = #tpu.core_type<tc>, window_params = [{transform_indices = @transform_0, window_bounds = array<i64: 16, 128>}, {transform_indices = @transform_1, window_bounds = array<i64: 2, 128, 256>}, {transform_indices = @transform_2, window_bounds = array<i64: 256, 128>}, {transform_indices = @transform_3, window_bounds = array<i64: 16, 128>}]} {
    %c0_i32 = arith.constant 0 : i32
    %0 = arith.cmpi eq, %arg1, %c0_i32 : i32
    %1 = arith.extui %0 : i1 to i32
    %c0_i32_0 = arith.constant 0 : i32
    %2 = arith.cmpi ne, %1, %c0_i32_0 : i32
    scf.if %2 {
      %cst_16 = arith.constant 0.000000e+00 : f32
      %23 = vector.broadcast %cst_16 : f32 to vector<16x128xf32>
      %c0_17 = arith.constant 0 : index
      %c0_18 = arith.constant 0 : index
      %24 = vector.load %arg5[%c0_17, %c0_18] : memref<16x128xf32, #tpu.memory_space<vmem>>, vector<16x128xf32>
      tpu.vector_store %arg5[%c0_17, %c0_18], %23 {strides = array<i32>} : memref<16x128xf32, #tpu.memory_space<vmem>>, vector<16x128xf32>,
    } else {
    }
    %c0 = arith.constant 0 : index
    %c0_1 = arith.constant 0 : index
    %3 = vector.load %arg2[%c0, %c0_1] : memref<16x128xbf16, #tpu.memory_space<vmem>>, vector<16x128xbf16>
    %c0_2 = arith.constant 0 : index
    %c0_3 = arith.constant 0 : index
    %c0_4 = arith.constant 0 : index
    %4 = vector.load %arg3[%c0_2, %c0_3, %c0_4] : memref<2x128x256xbf16, #tpu.memory_space<vmem>>, vector<1x128x256xbf16>
    %5 = vector.shape_cast %4 : vector<1x128x256xbf16> to vector<128x256xbf16>
    %cst = arith.constant dense<0.000000e+00> : vector<16x256xf32>
    %6 = tpu.matmul %3, %5, %cst {dimension_numbers = #tpu.dot_dimension_numbers<[1], [0], [0], [1], [0, 0, 1, 1], [], []>} : vector<16x128xbf16>, vector<128x256xbf16>, vector<16x256xf32> -> vector<16x256xf32>
    %c1 = arith.constant 1 : index
    %c0_5 = arith.constant 0 : index
    %c0_6 = arith.constant 0 : index
    %7 = vector.load %arg3[%c1, %c0_5, %c0_6] : memref<2x128x256xbf16, #tpu.memory_space<vmem>>, vector<1x128x256xbf16>
    %8 = vector.shape_cast %7 : vector<1x128x256xbf16> to vector<128x256xbf16>
    %cst_7 = arith.constant dense<0.000000e+00> : vector<16x256xf32>
    %9 = tpu.matmul %3, %8, %cst_7 {dimension_numbers = #tpu.dot_dimension_numbers<[1], [0], [0], [1], [0, 0, 1, 1], [], []>} : vector<16x128xbf16>, vector<128x256xbf16>, vector<16x256xf32> -> vector<16x256xf32>
    %10 = arith.negf %9 : vector<16x256xf32>
    %11 = math.exp %10 : vector<16x256xf32>
    %cst_8 = arith.constant 1.000000e+00 : f32
    %12 = vector.broadcast %cst_8 : f32 to vector<16x256xf32>
    %13 = arith.addf %12, %11 : vector<16x256xf32>
    %14 = arith.divf %12, %13 : vector<16x256xf32>
    %15 = arith.mulf %9, %14 : vector<16x256xf32>
    %16 = arith.mulf %6, %15 : vector<16x256xf32>
    %17 = arith.truncf %16 : vector<16x256xf32> to vector<16x256xbf16>
    %c0_9 = arith.constant 0 : index
    %c0_10 = arith.constant 0 : index
    %18 = vector.load %arg5[%c0_9, %c0_10] : memref<16x128xf32, #tpu.memory_space<vmem>>, vector<16x128xf32>
    %c0_11 = arith.constant 0 : index
    %c0_12 = arith.constant 0 : index
    %19 = vector.load %arg4[%c0_11, %c0_12] : memref<256x128xbf16, #tpu.memory_space<vmem>>, vector<256x128xbf16>
    %cst_13 = arith.constant dense<0.000000e+00> : vector<16x128xf32>
    %20 = tpu.matmul %17, %19, %cst_13 {dimension_numbers = #tpu.dot_dimension_numbers<[1], [0], [0], [1], [0, 0, 1, 1], [], []>} : vector<16x256xbf16>, vector<256x128xbf16>, vector<16x128xf32> -> vector<16x128xf32>
    %21 = arith.addf %18, %20 : vector<16x128xf32>
    %c0_14 = arith.constant 0 : index
    %c0_15 = arith.constant 0 : index
    %22 = vector.load %arg5[%c0_14, %c0_15] : memref<16x128xf32, #tpu.memory_space<vmem>>, vector<16x128xf32>
    tpu.vector_store %arg5[%c0_14, %c0_15], %21 {strides = array<i32>} : memref<16x128xf32, #tpu.memory_space<vmem>>, vector<16x128xf32>,
    return
  }
  func.func @transform_0(%arg0: i32, %arg1: i32) -> (i32, i32) {
    %c0_i32 = arith.constant 0 : i32
    %c0_i32_0 = arith.constant 0 : i32
    return %arg0, %c0_i32 : i32, i32
  }
  func.func @transform_1(%arg0: i32, %arg1: i32) -> (i32, i32, i32) {
    %c0_i32 = arith.constant 0 : i32
    %c0_i32_0 = arith.constant 0 : i32
    %c0_i32_1 = arith.constant 0 : i32
    return %c0_i32, %c0_i32_0, %arg1 : i32, i32, i32
  }
  func.func @transform_2(%arg0: i32, %arg1: i32) -> (i32, i32) {
    %c0_i32 = arith.constant 0 : i32
    %c0_i32_0 = arith.constant 0 : i32
    return %arg1, %c0_i32 : i32, i32
  }
  func.func @transform_3(%arg0: i32, %arg1: i32) -> (i32, i32) {
    %c0_i32 = arith.constant 0 : i32
    %c0_i32_0 = arith.constant 0 : i32
    return %arg0, %c0_i32 : i32, i32
  }
}

</mosaic_0001>

<llo_original>
// kernel: tpu_custom_call.1
$region0: #{tpu_custom_call.1}
  #allocation0 [shape = 'u32[]', space=smem, size = 0x4, offset = 0x4, fixed_abs, tag = 'smem constant byte address 0x4 - core index']
  #allocation1 [shape = 'u32[144,128]{1,0:T(1,128)}', space=vmem, size = 0x12000, scoped, tag = 'internal scratch']
  %s0 = inlined_call_operand.hbm [shape: bf16[16,128], index: 0, kind: input, shape index: {}]
  %s1 = inlined_call_operand.hbm [shape: bf16[2,128,256], index: 1, kind: input, shape index: {}]
  %s2 = inlined_call_operand.hbm [shape: bf16[256,128], index: 2, kind: input, shape index: {}]
  %s3 = inlined_call_operand.hbm [shape: f32[16,128], index: 3, kind: output, shape index: {}]
  %s4 = sld [smem:[#allocation0]]
  $region38: #{tpu_custom_call.1} parent=0
    _
  %s6 = ssub.s32 1, %s4
  %s7 = scalar_select 0, %s6, %s4
  $region1: #{tpu_custom_call.1} parent=0
    #allocation2 [shape = 'u8[4096]{0}', space=vmem, size = 0x1000, scoped, tag = 'input window, operand 0, single buffered']
    #allocation3 [shape = 's32[1]{0}', space=sflag, size = 0x4, scoped, tag = 'scoped memory for tpu_custom_call.1']
    #allocation4 [shape = 's32[1]{0}', space=sflag, size = 0x4, scoped, tag = 'scoped memory for tpu_custom_call.1']
    #allocation5 [shape = 'u8[131072]{0}', space=vmem, size = 0x20000, scoped, tag = 'input window, operand 1, single buffered']
    #allocation6 [shape = 's32[1]{0}', space=sflag, size = 0x4, scoped, tag = 'scoped memory for tpu_custom_call.1']
    #allocation7 [shape = 'u8[65536]{0}', space=vmem, size = 0x10000, scoped, tag = 'input window, operand 2, single buffered']
    #allocation8 [shape = 'u8[8192]{0}', space=vmem, size = 0x2000, scoped, tag = 'output window, operand 0, single buffered']
    %8 = vsyncpa [#allocation3], 0
    %9 = vsyncpa [#allocation6], 0
    %10 = vsyncpa [#allocation4], 0
    // Predicated region
    $region2: #{tpu_custom_call.1} parent=1 // pred_check
      _
    $region3: #{tpu_custom_call.1} parent=1 // pred_check_branch
      %12 = sbr.rel (0) target = $region5
    $region4: #{tpu_custom_call.1} parent=1 // pred_region
      %s14 = ssub.s32 128, 128
      %15 = vsyncadd [#allocation3], %s14
      %s16 = sshll.u32 [#allocation2], 4
      %s17 = int_to_ptr.vmem [resolvable:$true] %s16
      %22 = dma.hbm_to_vmem [thread:$0]  %s0, 128, %s17, [#allocation3], 64, 64, 4
    $region5: #{tpu_custom_call.1} parent=1 // pred_fallthru
      _
    // Predicated region
    $region6: #{tpu_custom_call.1} parent=1 // pred_check
      _
    $region7: #{tpu_custom_call.1} parent=1 // pred_check_branch
      %24 = sbr.rel (0) target = $region9
    $region8: #{tpu_custom_call.1} parent=1 // pred_region
      %s26 = ssub.s32 4096, 4096
      %27 = vsyncadd [#allocation6], %s26
      %s28 = sshll.u32 [#allocation5], 4
      %s29 = int_to_ptr.vmem [resolvable:$true] %s28
      %34 = dma.hbm_to_vmem [thread:$0]  %s1, 4096, %s29, [#allocation6], 128, 128, 8
    $region9: #{tpu_custom_call.1} parent=1 // pred_fallthru
      _
    // Predicated region
    $region10: #{tpu_custom_call.1} parent=1 // pred_check
      _
    $region11: #{tpu_custom_call.1} parent=1 // pred_check_branch
      %36 = sbr.rel (0) target = $region13
    $region12: #{tpu_custom_call.1} parent=1 // pred_region
      %s38 = ssub.s32 2048, 2048
      %39 = vsyncadd [#allocation6], %s38
      %s40 = sshll.u32 [#allocation7], 4
      %s41 = int_to_ptr.vmem [resolvable:$true] %s40
      %46 = dma.hbm_to_vmem [thread:$0]  %s2, 2048, %s41, [#allocation6], 64, 64, 4
    $region13: #{tpu_custom_call.1} parent=1 // pred_fallthru
      _
    // Predicated region
    $region14: #{tpu_custom_call.1} parent=1 // pred_check
      _
    $region15: #{tpu_custom_call.1} parent=1 // pred_check_branch
      %48 = sbr.rel (0) target = $region17
    $region16: #{tpu_custom_call.1} parent=1 // pred_region
      %49 = dma.done [#allocation3], 128
    $region17: #{tpu_custom_call.1} parent=1 // pred_fallthru
      _
    // Predicated region
    $region18: #{tpu_custom_call.1} parent=1 // pred_check
      _
    $region19: #{tpu_custom_call.1} parent=1 // pred_check_branch
      %51 = sbr.rel (0) target = $region21
    $region20: #{tpu_custom_call.1} parent=1 // pred_region
      %52 = dma.done [#allocation6], 4096
    $region21: #{tpu_custom_call.1} parent=1 // pred_fallthru
      _
    // Predicated region
    $region22: #{tpu_custom_call.1} parent=1 // pred_check
      _
    $region23: #{tpu_custom_call.1} parent=1 // pred_check_branch
      %54 = sbr.rel (0) target = $region25
    $region24: #{tpu_custom_call.1} parent=1 // pred_region
      %55 = dma.done [#allocation6], 2048
    $region25: #{tpu_custom_call.1} parent=1 // pred_fallthru
      _
    %p57 = scmp.eq.s32.totalorder 0, 0
    // Predicated region
    $region26: #{tpu_custom_call.1} parent=1 // pred_check
      %p58 = pneg %p57
    $region27: #{tpu_custom_call.1} parent=1 // pred_check_branch
      %60 = sbr.rel (%p58) target = $region29
    $region28: #{tpu_custom_call.1} parent=1 // pred_region
      %61 = vst [vmem:[#allocation8] sm:$0xff] 0.0
      %62 = vst [vmem:[#allocation8 + $0x8] sm:$0xff] 0.0
    $region29: #{tpu_custom_call.1} parent=1 // pred_fallthru
      _
    %v63 = vld [vmem:[#allocation2] sm:$0xf]
    %v64 = vld [vmem:[#allocation2 + $0x4] sm:$0xf]
    %v65 = vld [vmem:[#allocation5] sm:$0xff]
    %v66 = vld [vmem:[#allocation5 + $0x8] sm:$0xff]
    %v67 = vld [vmem:[#allocation5 + $0x10] sm:$0xff]
    %v68 = vld [vmem:[#allocation5 + $0x18] sm:$0xff]
    %v69 = vld [vmem:[#allocation5 + $0x20] sm:$0xff]
    %v70 = vld [vmem:[#allocation5 + $0x28] sm:$0xff]
    %v71 = vld [vmem:[#allocation5 + $0x30] sm:$0xff]
    %v72 = vld [vmem:[#allocation5 + $0x38] sm:$0xff]
    %v73 = vld [vmem:[#allocation5 + $0x40] sm:$0xff]
    %v74 = vld [vmem:[#allocation5 + $0x48] sm:$0xff]
    %v75 = vld [vmem:[#allocation5 + $0x50] sm:$0xff]
    %v76 = vld [vmem:[#allocation5 + $0x58] sm:$0xff]
    %v77 = vld [vmem:[#allocation5 + $0x60] sm:$0xff]
    %v78 = vld [vmem:[#allocation5 + $0x68] sm:$0xff]
    %v79 = vld [vmem:[#allocation5 + $0x70] sm:$0xff]
    %v80 = vld [vmem:[#allocation5 + $0x78] sm:$0xff]
    %v83 = vunpack.c.l.b16 %v63
    %v84 = vunpack.c.l.b16 %v64
    %v85 = vpack.c.b16 %v84, %v83
    %v103 = vunpack.c.l.b16 %v65
    %v104 = vunpack.c.h.b16 %v65
    %v105 = vunpack.c.l.b16 %v66
    %v106 = vunpack.c.h.b16 %v66
    %v107 = vunpack.c.l.b16 %v67
    %v108 = vunpack.c.h.b16 %v67
    %v109 = vunpack.c.l.b16 %v68
    %v110 = vunpack.c.h.b16 %v68
    %v111 = vunpack.c.l.b16 %v69
    %v112 = vunpack.c.h.b16 %v69
    %v113 = vunpack.c.l.b16 %v70
    %v114 = vunpack.c.h.b16 %v70
    %v115 = vunpack.c.l.b16 %v71
    %v116 = vunpack.c.h.b16 %v71
    %v117 = vunpack.c.l.b16 %v72
    %v118 = vunpack.c.h.b16 %v72
    %v119 = vunpack.c.l.b16 %v73
    %v120 = vunpack.c.h.b16 %v73
    %v121 = vunpack.c.l.b16 %v74
    %v122 = vunpack.c.h.b16 %v74
    %v123 = vunpack.c.l.b16 %v75
    %v124 = vunpack.c.h.b16 %v75
    %v125 = vunpack.c.l.b16 %v76
    %v126 = vunpack.c.h.b16 %v76
    %v127 = vunpack.c.l.b16 %v77
    %v128 = vunpack.c.h.b16 %v77
    %v129 = vunpack.c.l.b16 %v78
    %v130 = vunpack.c.h.b16 %v78
    %v131 = vunpack.c.l.b16 %v79
    %v132 = vunpack.c.h.b16 %v79
    %v133 = vunpack.c.l.b16 %v80
    %v134 = vunpack.c.h.b16 %v80
    %v135 = vpack.c.b16 %v105, %v103
    %v136 = vpack.c.b16 %v106, %v104
    %v137 = vpack.c.b16 %v109, %v107
    %v138 = vpack.c.b16 %v110, %v108
    %v139 = vpack.c.b16 %v113, %v111
    %v140 = vpack.c.b16 %v114, %v112
    %v141 = vpack.c.b16 %v117, %v115
    %v142 = vpack.c.b16 %v118, %v116
    %v143 = vpack.c.b16 %v121, %v119
    %v144 = vpack.c.b16 %v122, %v120
    %v145 = vpack.c.b16 %v125, %v123
    %v146 = vpack.c.b16 %v126, %v124
    %v147 = vpack.c.b16 %v129, %v127
    %v148 = vpack.c.b16 %v130, %v128
    %v149 = vpack.c.b16 %v133, %v131
    %v150 = vpack.c.b16 %v134, %v132
    %167 = vmatprep.subr.bf16.mxu0 %v150
    %168 = vmatpush1.bf16.msra.mxu0 %v149
    %169 = vmatprep.subr.bf16.mxu0 %v148
    %170 = vmatpush1.bf16.msra.mxu0 %v147
    %171 = vmatprep.subr.bf16.mxu0 %v146
    %172 = vmatpush1.bf16.msra.mxu0 %v145
    %173 = vmatprep.subr.bf16.mxu0 %v144
    %174 = vmatpush1.bf16.msra.mxu0 %v143
    %175 = vmatprep.subr.bf16.mxu0 %v142
    %176 = vmatpush1.bf16.msra.mxu0 %v141
    %177 = vmatprep.subr.bf16.mxu0 %v140
    %178 = vmatpush1.bf16.msra.mxu0 %v139
    %179 = vmatprep.subr.bf16.mxu0 %v138
    %180 = vmatpush1.bf16.msra.mxu0 %v137
    %181 = vmatprep.subr.bf16.mxu0 %v136
    %182 = vmatpush1.bf16.msra.mxu0 %v135
    %183 = vmatprep.subr.bf16.mxu0 0
    %184 = vmatpush2.bf16.msra.mxu0 0
    %185 = vmatprep.subr.bf16.mxu0 0
    %186 = vmatpush2.bf16.msra.mxu0 0
    %187 = vmatprep.subr.bf16.mxu0 0
    %188 = vmatpush2.bf16.msra.mxu0 0
    %189 = vmatprep.subr.bf16.mxu0 0
    %190 = vmatpush2.bf16.msra.mxu0 0
    %191 = vmatprep.subr.bf16.mxu0 0
    %192 = vmatpush2.bf16.msra.mxu0 0
    %193 = vmatprep.subr.bf16.mxu0 0
    %194 = vmatpush2.bf16.msra.mxu0 0
    %195 = vmatprep.subr.bf16.mxu0 0
    %196 = vmatpush2.bf16.msra.mxu0 0
    %197 = vmatprep.subr.bf16.mxu0 0
    %198 = vmatpush2.bf16.msra.mxu0 0
    %199 = vmatprep.mubr.bf16.mxu0 0
    %200 = vmatmul.mubr.bf16.gmra.mxu0 %v85
    %v201 = vpop.f32.mrf.mxu0
    %v202 = vadd.f32 0.0, %v201
    %v203 = vpop.f32.mrf.mxu0
    %v204 = vadd.f32 0.0, %v203
    %v205 = vpop.f32.mrf.mxu0
    %v206 = vadd.f32 0.0, %v205
    %v207 = vpop.f32.mrf.mxu0
    %v208 = vadd.f32 0.0, %v207
    %209 = vdwg.mxu0
    %s210 = scalar_lea.vmem [#allocation5], 128
    %v211 = vld [vmem:[%s210] sm:$0xff]
    %v212 = vld [vmem:[%s210 + $0x8] sm:$0xff]
    %v213 = vld [vmem:[%s210 + $0x10] sm:$0xff]
    %v214 = vld [vmem:[%s210 + $0x18] sm:$0xff]
    %v215 = vld [vmem:[%s210 + $0x20] sm:$0xff]
    %v216 = vld [vmem:[%s210 + $0x28] sm:$0xff]
    %v217 = vld [vmem:[%s210 + $0x30] sm:$0xff]
    %v218 = vld [vmem:[%s210 + $0x38] sm:$0xff]
    %v219 = vld [vmem:[%s210 + $0x40] sm:$0xff]
    %v220 = vld [vmem:[%s210 + $0x48] sm:$0xff]
    %v221 = vld [vmem:[%s210 + $0x50] sm:$0xff]
    %v222 = vld [vmem:[%s210 + $0x58] sm:$0xff]
    %v223 = vld [vmem:[%s210 + $0x60] sm:$0xff]
    %v224 = vld [vmem:[%s210 + $0x68] sm:$0xff]
    %v225 = vld [vmem:[%s210 + $0x70] sm:$0xff]
    %v226 = vld [vmem:[%s210 + $0x78] sm:$0xff]
    %v243 = vunpack.c.l.b16 %v211
    %v244 = vunpack.c.h.b16 %v211
    %v245 = vunpack.c.l.b16 %v212
    %v246 = vunpack.c.h.b16 %v212
    %v247 = vunpack.c.l.b16 %v213
    %v248 = vunpack.c.h.b16 %v213
    %v249 = vunpack.c.l.b16 %v214
    %v250 = vunpack.c.h.b16 %v214
    %v251 = vunpack.c.l.b16 %v215
    %v252 = vunpack.c.h.b16 %v215
    %v253 = vunpack.c.l.b16 %v216
    %v254 = vunpack.c.h.b16 %v216
    %v255 = vunpack.c.l.b16 %v217
    %v256 = vunpack.c.h.b16 %v217
    %v257 = vunpack.c.l.b16 %v218
    %v258 = vunpack.c.h.b16 %v218
    %v259 = vunpack.c.l.b16 %v219
    %v260 = vunpack.c.h.b16 %v219
    %v261 = vunpack.c.l.b16 %v220
    %v262 = vunpack.c.h.b16 %v220
    %v263 = vunpack.c.l.b16 %v221
    %v264 = vunpack.c.h.b16 %v221
    %v265 = vunpack.c.l.b16 %v222
    %v266 = vunpack.c.h.b16 %v222
    %v267 = vunpack.c.l.b16 %v223
    %v268 = vunpack.c.h.b16 %v223
    %v269 = vunpack.c.l.b16 %v224
    %v270 = vunpack.c.h.b16 %v224
    %v271 = vunpack.c.l.b16 %v225
    %v272 = vunpack.c.h.b16 %v225
    %v273 = vunpack.c.l.b16 %v226
    %v274 = vunpack.c.h.b16 %v226
    %v275 = vpack.c.b16 %v245, %v243
    %v276 = vpack.c.b16 %v246, %v244
    %v277 = vpack.c.b16 %v249, %v247
    %v278 = vpack.c.b16 %v250, %v248
    %v279 = vpack.c.b16 %v253, %v251
    %v280 = vpack.c.b16 %v254, %v252
    %v281 = vpack.c.b16 %v257, %v255
    %v282 = vpack.c.b16 %v258, %v256
    %v283 = vpack.c.b16 %v261, %v259
    %v284 = vpack.c.b16 %v262, %v260
    %v285 = vpack.c.b16 %v265, %v263
    %v286 = vpack.c.b16 %v266, %v264
    %v287 = vpack.c.b16 %v269, %v267
    %v288 = vpack.c.b16 %v270, %v268
    %v289 = vpack.c.b16 %v273, %v271
    %v290 = vpack.c.b16 %v274, %v272
    %307 = vmatprep.subr.bf16.mxu0 %v290
    %308 = vmatpush1.bf16.msra.mxu0 %v289
    %309 = vmatprep.subr.bf16.mxu0 %v288
    %310 = vmatpush1.bf16.msra.mxu0 %v287
    %311 = vmatprep.subr.bf16.mxu0 %v286
    %312 = vmatpush1.bf16.msra.mxu0 %v285
    %313 = vmatprep.subr.bf16.mxu0 %v284
    %314 = vmatpush1.bf16.msra.mxu0 %v283
    %315 = vmatprep.subr.bf16.mxu0 %v282
    %316 = vmatpush1.bf16.msra.mxu0 %v281
    %317 = vmatprep.subr.bf16.mxu0 %v280
    %318 = vmatpush1.bf16.msra.mxu0 %v279
    %319 = vmatprep.subr.bf16.mxu0 %v278
    %320 = vmatpush1.bf16.msra.mxu0 %v277
    %321 = vmatprep.subr.bf16.mxu0 %v276
    %322 = vmatpush1.bf16.msra.mxu0 %v275
    %323 = vmatprep.subr.bf16.mxu0 0
    %324 = vmatpush2.bf16.msra.mxu0 0
    %325 = vmatprep.subr.bf16.mxu0 0
    %326 = vmatpush2.bf16.msra.mxu0 0
    %327 = vmatprep.subr.bf16.mxu0 0
    %328 = vmatpush2.bf16.msra.mxu0 0
    %329 = vmatprep.subr.bf16.mxu0 0
    %330 = vmatpush2.bf16.msra.mxu0 0
    %331 = vmatprep.subr.bf16.mxu0 0
    %332 = vmatpush2.bf16.msra.mxu0 0
    %333 = vmatprep.subr.bf16.mxu0 0
    %334 = vmatpush2.bf16.msra.mxu0 0
    %335 = vmatprep.subr.bf16.mxu0 0
    %336 = vmatpush2.bf16.msra.mxu0 0
    %337 = vmatprep.subr.bf16.mxu0 0
    %338 = vmatpush2.bf16.msra.mxu0 0
    %339 = vmatprep.mubr.bf16.mxu0 0
    %340 = vmatmul.mubr.bf16.gmra.mxu0 %v85
    %v341 = vpop.f32.mrf.mxu0
    %v342 = vadd.f32 0.0, %v341
    %v343 = vpop.f32.mrf.mxu0
    %v344 = vadd.f32 0.0, %v343
    %v345 = vpop.f32.mrf.mxu0
    %v346 = vadd.f32 0.0, %v345
    %v347 = vpop.f32.mrf.mxu0
    %v348 = vadd.f32 0.0, %v347
    %349 = vdwg.mxu0
    %v350 = vxor.u32 %v342, 2147483648
    %v351 = vxor.u32 %v344, 2147483648
    %v352 = vxor.u32 %v346, 2147483648
    %v353 = vxor.u32 %v348, 2147483648
    %v354 = vmul.f32 %v350, 1.442695
    %v355 = vpow.pop %v354
    %v356 = vmul.f32 %v351, 1.442695
    %v357 = vpow.pop %v356
    %v358 = vmul.f32 %v352, 1.442695
    %v359 = vpow.pop %v358
    %v360 = vmul.f32 %v353, 1.442695
    %v361 = vpow.pop %v360
    %v362 = vadd.f32 %v355, 1.0
    %v363 = vadd.f32 %v357, 1.0
    %v364 = vadd.f32 %v359, 1.0
    %v365 = vadd.f32 %v361, 1.0
    %v366 = vrcp.pop %v362
    %v367 = vmul.f32 1.0, %v366
    %v368 = vrcp.pop %v363
    %v369 = vmul.f32 1.0, %v368
    %v370 = vrcp.pop %v364
    %v371 = vmul.f32 1.0, %v370
    %v372 = vrcp.pop %v365
    %v373 = vmul.f32 1.0, %v372
    %v374 = vmul.f32 %v342, %v367
    %v375 = vmul.f32 %v344, %v369
    %v376 = vmul.f32 %v346, %v371
    %v377 = vmul.f32 %v348, %v373
    %v378 = vmul.f32 %v202, %v374
    %v379 = vmul.f32 %v204, %v375
    %v380 = vmul.f32 %v206, %v376
    %v381 = vmul.f32 %v208, %v377
    %v382 = vpack.c.bf16 %v380, %v378
    %v383 = vpack.c.bf16 %v381, %v379
    %v384 = vld [vmem:[#allocation8] sm:$0xff]
    %v385 = vld [vmem:[#allocation8 + $0x8] sm:$0xff]
    %v386 = vld [vmem:[#allocation7] sm:$0xf]
    %v387 = vld [vmem:[#allocation7 + $0x4] sm:$0xf]
    %v388 = vld [vmem:[#allocation7 + $0x8] sm:$0xf]
    %v389 = vld [vmem:[#allocation7 + $0xc] sm:$0xf]
    %v390 = vld [vmem:[#allocation7 + $0x10] sm:$0xf]
    %v391 = vld [vmem:[#allocation7 + $0x14] sm:$0xf]
    %v392 = vld [vmem:[#allocation7 + $0x18] sm:$0xf]
    %v393 = vld [vmem:[#allocation7 + $0x1c] sm:$0xf]
    %v394 = vld [vmem:[#allocation7 + $0x20] sm:$0xf]
    %v395 = vld [vmem:[#allocation7 + $0x24] sm:$0xf]
    %v396 = vld [vmem:[#allocation7 + $0x28] sm:$0xf]
    %v397 = vld [vmem:[#allocation7 + $0x2c] sm:$0xf]
    %v398 = vld [vmem:[#allocation7 + $0x30] sm:$0xf]
    %v399 = vld [vmem:[#allocation7 + $0x34] sm:$0xf]
    %v400 = vld [vmem:[#allocation7 + $0x38] sm:$0xf]
    %v401 = vld [vmem:[#allocation7 + $0x3c] sm:$0xf]
    %v402 = vld [vmem:[#allocation7 + $0x40] sm:$0xf]
    %v403 = vld [vmem:[#allocation7 + $0x44] sm:$0xf]
    %v404 = vld [vmem:[#allocation7 + $0x48] sm:$0xf]
    %v405 = vld [vmem:[#allocation7 + $0x4c] sm:$0xf]
    %v406 = vld [vmem:[#allocation7 + $0x50] sm:$0xf]
    %v407 = vld [vmem:[#allocation7 + $0x54] sm:$0xf]
    %v408 = vld [vmem:[#allocation7 + $0x58] sm:$0xf]
    %v409 = vld [vmem:[#allocation7 + $0x5c] sm:$0xf]
    %v410 = vld [vmem:[#allocation7 + $0x60] sm:$0xf]
    %v411 = vld [vmem:[#allocation7 + $0x64] sm:$0xf]
    %v412 = vld [vmem:[#allocation7 + $0x68] sm:$0xf]
    %v413 = vld [vmem:[#allocation7 + $0x6c] sm:$0xf]
    %v414 = vld [vmem:[#allocation7 + $0x70] sm:$0xf]
    %v415 = vld [vmem:[#allocation7 + $0x74] sm:$0xf]
    %v416 = vld [vmem:[#allocation7 + $0x78] sm:$0xf]
    %v417 = vld [vmem:[#allocation7 + $0x7c] sm:$0xf]
    %v450 = vunpack.c.l.b16 %v386
    %v451 = vunpack.c.l.b16 %v387
    %v452 = vunpack.c.l.b16 %v388
    %v453 = vunpack.c.l.b16 %v389
    %v454 = vunpack.c.l.b16 %v390
    %v455 = vunpack.c.l.b16 %v391
    %v456 = vunpack.c.l.b16 %v392
    %v457 = vunpack.c.l.b16 %v393
    %v458 = vunpack.c.l.b16 %v394
    %v459 = vunpack.c.l.b16 %v395
    %v460 = vunpack.c.l.b16 %v396
    %v461 = vunpack.c.l.b16 %v397
    %v462 = vunpack.c.l.b16 %v398
    %v463 = vunpack.c.l.b16 %v399
    %v464 = vunpack.c.l.b16 %v400
    %v465 = vunpack.c.l.b16 %v401
    %v466 = vunpack.c.l.b16 %v402
    %v467 = vunpack.c.l.b16 %v403
    %v468 = vunpack.c.l.b16 %v404
    %v469 = vunpack.c.l.b16 %v405
    %v470 = vunpack.c.l.b16 %v406
    %v471 = vunpack.c.l.b16 %v407
    %v472 = vunpack.c.l.b16 %v408
    %v473 = vunpack.c.l.b16 %v409
    %v474 = vunpack.c.l.b16 %v410
    %v475 = vunpack.c.l.b16 %v411
    %v476 = vunpack.c.l.b16 %v412
    %v477 = vunpack.c.l.b16 %v413
    %v478 = vunpack.c.l.b16 %v414
    %v479 = vunpack.c.l.b16 %v415
    %v480 = vunpack.c.l.b16 %v416
    %v481 = vunpack.c.l.b16 %v417
    %v482 = vpack.c.b16 %v451, %v450
    %v483 = vpack.c.b16 %v453, %v452
    %v484 = vpack.c.b16 %v455, %v454
    %v485 = vpack.c.b16 %v457, %v456
    %v486 = vpack.c.b16 %v459, %v458
    %v487 = vpack.c.b16 %v461, %v460
    %v488 = vpack.c.b16 %v463, %v462
    %v489 = vpack.c.b16 %v465, %v464
    %v490 = vpack.c.b16 %v467, %v466
    %v491 = vpack.c.b16 %v469, %v468
    %v492 = vpack.c.b16 %v471, %v470
    %v493 = vpack.c.b16 %v473, %v472
    %v494 = vpack.c.b16 %v475, %v474
    %v495 = vpack.c.b16 %v477, %v476
    %v496 = vpack.c.b16 %v479, %v478
    %v497 = vpack.c.b16 %v481, %v480
    %514 = vmatprep.subr.bf16.mxu0 0
    %515 = vmatpush1.bf16.msra.mxu0 %v489
    %516 = vmatprep.subr.bf16.mxu0 0
    %517 = vmatpush1.bf16.msra.mxu0 %v488
    %518 = vmatprep.subr.bf16.mxu0 0
    %519 = vmatpush1.bf16.msra.mxu0 %v487
    %520 = vmatprep.subr.bf16.mxu0 0
    %521 = vmatpush1.bf16.msra.mxu0 %v486
    %522 = vmatprep.subr.bf16.mxu0 0
    %523 = vmatpush1.bf16.msra.mxu0 %v485
    %524 = vmatprep.subr.bf16.mxu0 0
    %525 = vmatpush1.bf16.msra.mxu0 %v484
    %526 = vmatprep.subr.bf16.mxu0 0
    %527 = vmatpush1.bf16.msra.mxu0 %v483
    %528 = vmatprep.subr.bf16.mxu0 0
    %529 = vmatpush1.bf16.msra.mxu0 %v482
    %530 = vmatprep.subr.bf16.mxu0 0
    %531 = vmatpush2.bf16.msra.mxu0 %v497
    %532 = vmatprep.subr.bf16.mxu0 0
    %533 = vmatpush2.bf16.msra.mxu0 %v496
    %534 = vmatprep.subr.bf16.mxu0 0
    %535 = vmatpush2.bf16.msra.mxu0 %v495
    %536 = vmatprep.subr.bf16.mxu0 0
    %537 = vmatpush2.bf16.msra.mxu0 %v494
    %538 = vmatprep.subr.bf16.mxu0 0
    %539 = vmatpush2.bf16.msra.mxu0 %v493
    %540 = vmatprep.subr.bf16.mxu0 0
    %541 = vmatpush2.bf16.msra.mxu0 %v492
    %542 = vmatprep.subr.bf16.mxu0 0
    %543 = vmatpush2.bf16.msra.mxu0 %v491
    %544 = vmatprep.subr.bf16.mxu0 0
    %545 = vmatpush2.bf16.msra.mxu0 %v490
    %546 = vmatprep.mubr.bf16.mxu0 %v383
    %547 = vmatmul.mubr.bf16.gmra.mxu0 %v382
    %v548 = vpop.f32.mrf.mxu0
    %v549 = vadd.f32 0.0, %v548
    %v550 = vpop.f32.mrf.mxu0
    %v551 = vpop.f32.mrf.mxu0
    %v552 = vadd.f32 0.0, %v551
    %v553 = vpop.f32.mrf.mxu0
    %554 = vdwg.mxu0
    %v555 = vadd.f32 %v384, %v549
    %v556 = vadd.f32 %v385, %v552
    %557 = vst [vmem:[#allocation8] sm:$0xff] %v555
    %558 = vst [vmem:[#allocation8 + $0x8] sm:$0xff] %v556
    // Predicated region
    $region30: #{tpu_custom_call.1} parent=1 // pred_check
      _
    $region31: #{tpu_custom_call.1} parent=1 // pred_check_branch
      %560 = sbr.rel (0) target = $region33
    $region32: #{tpu_custom_call.1} parent=1 // pred_region
      %s562 = ssub.s32 256, 256
      %563 = vsyncadd [#allocation4], %s562
      %s564 = sshll.u32 [#allocation8], 4
      %s565 = int_to_ptr.vmem [resolvable:$true] %s564
      %570 = dma.vmem_to_hbm [thread:$0]  %s565, 256, %s3, [#allocation4], 128, 128, 8
    $region33: #{tpu_custom_call.1} parent=1 // pred_fallthru
      _
    // Predicated region
    $region34: #{tpu_custom_call.1} parent=1 // pred_check
      _
    $region35: #{tpu_custom_call.1} parent=1 // pred_check_branch
      %572 = sbr.rel (0) target = $region37
    $region36: #{tpu_custom_call.1} parent=1 // pred_region
      %573 = dma.done [#allocation4], 256
    $region37: #{tpu_custom_call.1} parent=1 // pred_fallthru
      _
    %574 = vsyncpa [#allocation3], 1
    %575 = vsyncpa [#allocation6], 1
    %576 = vsyncpa [#allocation4], 1

</llo_original>
